<compile_context>
chip_gen: v5e
topology: v5e:2x2
jax: 0.10.0
libtpu: 0.0.40
codegen_flags: <defaults>
</compile_context>

<pallas_src>
import functools

import jax
import jax.numpy as jnp
from jax.experimental import pallas as pl
from jax.experimental.pallas import tpu as pltpu


_LANES = 128
# 8192 x 128 x f32 = 4 MiB per input block; 2 inputs x double-buffer ~= 16 MiB VMEM.
_MAX_TILE_ROWS = 8192
# Aim for >= 4 grid blocks when possible so the 'parallel' axis load-balances
# across both TensorCores on v7x (harmless on single-core v5e/v6e).
_MIN_GRID_BLOCKS = 4
# Below this element count the pure-JAX path is used (fixed pallas_call / grid
# overhead dominates for tiny tensors).
# TODO(synk): raise to ~1M elements in production; kept tiny here so the small
# self-test shapes still exercise the Pallas kernel.
_PALLAS_MIN_ELEMENTS = 8 * _LANES


def _sublane_multiple(dtype) -> int:
    """Minimum second-to-last tile dim for a dtype: 8 (4B), 16 (2B), 32 (1B)."""
    return max(8, 32 // jnp.dtype(dtype).itemsize)


def _partial_sums_kernel(pred_ref, ref_ref, out_ref, *, n_rows, tile_rows):
    """Per grid step, write a (1, 2, 128) block of per-lane partial sums:
         out[0, 0, :] = sum over this tile's rows of |pred - ref|   (per lane)
         out[0, 1, :] = sum over this tile's rows of (pred - ref)^2 (per lane)
    The input view is lane-dense (n_rows, 128); inputs stream in their native
    dtype and are upcast to f32 in-register for accumulation.
    """
    p = pred_ref[...].astype(jnp.float32)
    r = ref_ref[...].astype(jnp.float32)
    d = p - r
    if n_rows % tile_rows != 0:
        # Static check: the mask is only emitted when the last block is partial.
        row = (pl.program_id(0) * tile_rows
               + jax.lax.broadcasted_iota(jnp.int32, d.shape, 0))
        # Mask BEFORE abs/square so garbage (NaN/Inf) from the out-of-range rows
        # of the edge block can never propagate into the sums.
        d = jnp.where(row < n_rows, d, 0.0)
    ad = jnp.sum(jnp.abs(d), axis=0, keepdims=True)   # (1, 128)
    sd = jnp.sum(d * d, axis=0, keepdims=True)        # (1, 128)
    # Single merged store of the whole (1, 2, 128) output block.
    out_ref[...] = jnp.concatenate([ad, sd], axis=0)[None]


def _jax_lane_sums(pred_flat, ref_flat):
    """Per-lane (128,) f32 sums in pure JAX (tiny tensors and the <128-elem tail)."""
    n = pred_flat.shape[0]
    if n == 0:
        z = jnp.zeros((_LANES,), jnp.float32)
        return z, z
    pad = (-n) % _LANES
    if pad:
        pred_flat = jnp.pad(pred_flat, (0, pad))
        ref_flat = jnp.pad(ref_flat, (0, pad))
    d = (pred_flat.astype(jnp.float32) - ref_flat.astype(jnp.float32)).reshape(-1, _LANES)
    return jnp.sum(jnp.abs(d), axis=0), jnp.sum(d * d, axis=0)


def _lane_sums(pred_flat, ref_flat):
    """(128,) f32 per-lane sums of |pred - ref| and (pred - ref)^2 over all elements.

    Row-major flatten + 128 % 4 == 0 means the 'rgbo' channel of lane l is l % 4,
    so the channel split lives entirely in the JAX epilogue.
    """
    total = pred_flat.shape[0]
    if total < _PALLAS_MIN_ELEMENTS:
        return _jax_lane_sums(pred_flat, ref_flat)

    n_rows = total // _LANES
    prefix = n_rows * _LANES

    sub = max(_sublane_multiple(pred_flat.dtype), _sublane_multiple(ref_flat.dtype))
    if n_rows <= sub:
        tile_rows = n_rows                       # one full-extent block (always legal)
    else:
        # Big blocks (amortize per-step overhead) but keep >= _MIN_GRID_BLOCKS blocks
        # when the tensor is large enough, so both TCs stream HBM on v7x.
        target = min(_MAX_TILE_ROWS, pl.cdiv(n_rows, _MIN_GRID_BLOCKS))
        tile_rows = max(sub, (target // sub) * sub)
    num_blocks = pl.cdiv(n_rows, tile_rows)

    # Multiple-of-128 element counts: these reshapes are bitcasts (no HBM copy).
    # Ragged counts: only the 128-aligned prefix is sliced (one contiguous copy);
    # the <128-element tail is folded in pure JAX below (no full-tensor pad pass).
    pred2d = pred_flat[:prefix].reshape(n_rows, _LANES)
    ref2d = ref_flat[:prefix].reshape(n_rows, _LANES)

    in_bytes = prefix * (pred_flat.dtype.itemsize + ref_flat.dtype.itemsize)
    out_bytes = num_blocks * 2 * _LANES * 4

    kernel = functools.partial(_partial_sums_kernel, n_rows=n_rows, tile_rows=tile_rows)
    partials = pl.pallas_call(
        kernel,
        out_shape=jax.ShapeDtypeStruct((num_blocks, 2, _LANES), jnp.float32),
        grid_spec=pltpu.PrefetchScalarGridSpec(
            num_scalar_prefetch=0,
            grid=(num_blocks,),
            in_specs=[
                pl.BlockSpec((tile_rows, _LANES), lambda i: (i, 0)),
                pl.BlockSpec((tile_rows, _LANES), lambda i: (i, 0)),
            ],
            out_specs=pl.BlockSpec((1, 2, _LANES), lambda i: (i, 0, 0)),
        ),
        compiler_params=pltpu.CompilerParams(
            # Independent per-block partials -> shardable across both TCs on v7x;
            # harmless on single-core v5e/v6e.
            dimension_semantics=("parallel",),
            # Up to 4 MiB f32 blocks x 2 inputs x double-buffer ~= 16 MiB; raise the
            # scoped-VMEM limit so v5e's 16 MiB default accepts the big tiles.
            vmem_limit_bytes=32 * 1024 * 1024,
        ),
        cost_estimate=pl.CostEstimate(
            flops=5 * prefix, transcendentals=0, bytes_accessed=in_bytes + out_bytes),
    )(pred2d, ref2d)

    ad_lane = jnp.sum(partials[:, 0, :], axis=0)
    sd_lane = jnp.sum(partials[:, 1, :], axis=0)

    if prefix != total:
        # Fold the <128-element ragged tail in pure JAX (channel of tail element j
        # is j % 4 because prefix % 128 == 0 and 128 % 4 == 0).
        ad_tail, sd_tail = _jax_lane_sums(pred_flat[prefix:], ref_flat[prefix:])
        ad_lane = ad_lane + ad_tail
        sd_lane = sd_lane + sd_tail
    return ad_lane, sd_lane


class LossNetWorldPallas:
    """JAX/Pallas re-implementation of LossNetWorld.forward (mean L1 / MSE losses)."""

    def __init__(self, mode: str, l1: float, l2: float, absorption_weight: float = 1.0):
        assert mode in ("rgbo", "density"), f"mode must be 'rgbo' or 'density', but is {mode}"
        assert l1 > 0 or l2 > 0, "at least one loss must be active"
        self._mode = mode
        self._l1weight = float(l1)
        self._l2weight = float(l2)
        self._absorption_weighting = float(absorption_weight)

    def mode(self):
        return self._mode

    def loss_names(self):
        if self._mode == "density":
            return ["l1", "l2", "total"]
        return ["l1rgb", "l1alpha", "l2rgb", "l2alpha", "total"]

    def __call__(self, prediction, reference, return_individual_losses=False):
        assert prediction.shape == reference.shape, "prediction/reference shapes must match"

        if self._mode == "density":
            n_elem = prediction.size
            ad_lane, sd_lane = _lane_sums(prediction.reshape(-1), reference.reshape(-1))
            l1 = jnp.sum(ad_lane) / n_elem
            l2 = jnp.sum(sd_lane) / n_elem
            total = None
            if self._l1weight > 0:
                total = self._l1weight * l1
            if self._l2weight > 0:
                total = self._l2weight * l2 if total is None else total + self._l2weight * l2
            if return_individual_losses:
                # jnp scalars (no host sync, jit-safe) in place of torch .item() floats.
                return total, {"l1": l1, "l2": l2, "total": total}
            return total

        # 'rgbo': channel-last, size-4 channel axis; row-major flatten is assumed
        # (jnp arrays are row-major, so lane % 4 == channel after reshape(-1)).
        assert prediction.shape[-1] == 4
        n_pix = prediction.size // 4
        ad_lane, sd_lane = _lane_sums(prediction.reshape(-1), reference.reshape(-1))
        rgb_mask = (jnp.arange(_LANES) % 4) < 3
        ad_rgb = jnp.sum(jnp.where(rgb_mask, ad_lane, 0.0))
        sd_rgb = jnp.sum(jnp.where(rgb_mask, sd_lane, 0.0))
        ad_alpha = jnp.sum(ad_lane) - ad_rgb
        sd_alpha = jnp.sum(sd_lane) - sd_rgb
        l1rgb = ad_rgb / (n_pix * 3)
        l1alpha = ad_alpha / n_pix
        l2rgb = sd_rgb / (n_pix * 3)
        l2alpha = sd_alpha / n_pix
        total = None
        if self._l1weight > 0:
            total = self._l1weight * l1rgb
            total = total + self._l1weight * self._absorption_weighting * l1alpha
        if self._l2weight > 0:
            total = self._l2weight * l2rgb if total is None else total + self._l2weight * l2rgb
            total = total + self._l2weight * self._absorption_weighting * l2alpha
        if return_individual_losses:
            return total, {"l1rgb": l1rgb, "l1alpha": l1alpha,
                           "l2rgb": l2rgb, "l2alpha": l2alpha, "total": total}
        return total


# ----------------------------- reference (pure JAX) -----------------------------

def _reference_rgbo(pred, ref, l1w, l2w, aw):
    xr, xa = pred[..., :3], pred[..., 3:]
    yr, ya = ref[..., :3], ref[..., 3:]
    l1rgb = jnp.mean(jnp.abs(xr - yr))
    l1alpha = jnp.mean(jnp.abs(xa - ya))
    l2rgb = jnp.mean((xr - yr) ** 2)
    l2alpha = jnp.mean((xa - ya) ** 2)
    total = l1w * l1rgb + l1w * aw * l1alpha + l2w * l2rgb + l2w * aw * l2alpha
    return total, (l1rgb, l1alpha, l2rgb, l2alpha)


def _reference_density(pred, ref, l1w, l2w):
    l1 = jnp.mean(jnp.abs(pred - ref))
    l2 = jnp.mean((pred - ref) ** 2)
    return l1w * l1 + l2w * l2, (l1, l2)


if __name__ == "__main__":
    key = jax.random.PRNGKey(0)
    keys = jax.random.split(key, 10)

    # --- 'rgbo' mode, small (B*C*H*W*4): 8192 elems -> 64 lane-rows, 4 blocks of 16 ---
    shape_rgbo = (2, 4, 16, 16, 4)
    pred_rgbo = jax.random.uniform(keys[0], shape_rgbo, jnp.float32)
    ref_rgbo = jax.random.uniform(keys[1], shape_rgbo, jnp.float32)

    net = LossNetWorldPallas(mode="rgbo", l1=1.0, l2=0.5, absorption_weight=2.0)
    total, parts = net(pred_rgbo, ref_rgbo, return_individual_losses=True)
    total = jax.block_until_ready(total)

    exp_total, (e_l1rgb, e_l1a, e_l2rgb, e_l2a) = _reference_rgbo(
        pred_rgbo, ref_rgbo, 1.0, 0.5, 2.0)
    assert jnp.allclose(total, exp_total, rtol=1e-5, atol=1e-6), (total, exp_total)
    assert jnp.allclose(parts["l1rgb"], e_l1rgb, rtol=1e-5, atol=1e-6)
    assert jnp.allclose(parts["l1alpha"], e_l1a, rtol=1e-5, atol=1e-6)
    assert jnp.allclose(parts["l2rgb"], e_l2rgb, rtol=1e-5, atol=1e-6)
    assert jnp.allclose(parts["l2alpha"], e_l2a, rtol=1e-5, atol=1e-6)

    # --- 'rgbo' mode, larger bf16 inputs: 1,048,576 elems -> 8192 lane-rows,
    #     4 blocks of 2048 rows, native-bf16 streaming with in-kernel f32 accumulation ---
    shape_big = (8, 8, 64, 64, 4)
    pred_big = jax.random.uniform(keys[2], shape_big, jnp.float32).astype(jnp.bfloat16)
    ref_big = jax.random.uniform(keys[3], shape_big, jnp.float32).astype(jnp.bfloat16)
    tot_big = jax.block_until_ready(net(pred_big, ref_big))
    exp_big, _ = _reference_rgbo(pred_big.astype(jnp.float32),
                                 ref_big.astype(jnp.float32), 1.0, 0.5, 2.0)
    assert jnp.allclose(tot_big, exp_big, rtol=5e-4, atol=1e-5), (tot_big, exp_big)

    # --- 'density' mode, small (B*C*H*W*1): 2048 elems -> 16 lane-rows, 2 blocks ---
    shape_den = (2, 4, 16, 16, 1)
    pred_den = jax.random.uniform(keys[4], shape_den, jnp.float32)
    ref_den = jax.random.uniform(keys[5], shape_den, jnp.float32)

    net_d = LossNetWorldPallas(mode="density", l1=1.0, l2=1.0)
    total_d = jax.block_until_ready(net_d(pred_den, ref_den))
    exp_d, _ = _reference_density(pred_den, ref_den, 1.0, 1.0)
    assert jnp.allclose(total_d, exp_d, rtol=1e-5, atol=1e-6), (total_d, exp_d)

    # --- 'density', size exercising multi-block + in-kernel partial-tile row mask ---
    shape_den2 = (5, 16, 16, 1)   # 1280 elems -> 10 lane-rows, tile 8, 2 blocks (last partial)
    pred_den2 = jax.random.uniform(keys[6], shape_den2, jnp.float32)
    ref_den2 = jax.random.uniform(keys[7], shape_den2, jnp.float32)
    total_d2 = jax.block_until_ready(net_d(pred_den2, ref_den2))
    exp_d2, _ = _reference_density(pred_den2, ref_den2, 1.0, 1.0)
    assert jnp.allclose(total_d2, exp_d2, rtol=1e-5, atol=1e-6), (total_d2, exp_d2)

    # --- 'density', non-multiple-of-128 element count: kernel prefix + pure-JAX tail ---
    shape_den3 = (3, 7, 61, 1)    # 1281 elems -> 1280-elem kernel prefix + 1-elem JAX tail
    pred_den3 = jax.random.uniform(keys[8], shape_den3, jnp.float32)
    ref_den3 = jax.random.uniform(keys[9], shape_den3, jnp.float32)
    total_d3 = jax.block_until_ready(net_d(pred_den3, ref_den3))
    exp_d3, _ = _reference_density(pred_den3, ref_den3, 1.0, 1.0)
    assert jnp.allclose(total_d3, exp_d3, rtol=1e-5, atol=1e-6), (total_d3, exp_d3)

    print("KERNEL_OK")
</pallas_src>

<mosaic_0001>
module attributes {stable_mosaic.version = 11 : i64} {
  func.func @_partial_sums_kernel(%arg0: i32, %arg1: memref<16x128xf32, #tpu.memory_space<vmem>>, %arg2: memref<16x128xf32, #tpu.memory_space<vmem>>, %arg3: memref<1x2x128xf32, #tpu.memory_space<vmem>>) attributes {dimension_semantics = [#tpu.dimension_semantics<parallel>], iteration_bounds = array<i64: 4>, scalar_prefetch = 0 : i64, scratch_operands = 0 : i64, tpu.core_type = #tpu.core_type<tc>, window_params = [{transform_indices = @transform_0, window_bounds = array<i64: 16, 128>}, {transform_indices = @transform_1, window_bounds = array<i64: 16, 128>}, {transform_indices = @transform_2, window_bounds = array<i64: 1, 2, 128>}]} {
    %c0 = arith.constant 0 : index
    %c0_0 = arith.constant 0 : index
    %0 = vector.load %arg1[%c0, %c0_0] : memref<16x128xf32, #tpu.memory_space<vmem>>, vector<16x128xf32>
    %c0_1 = arith.constant 0 : index
    %c0_2 = arith.constant 0 : index
    %1 = vector.load %arg2[%c0_1, %c0_2] : memref<16x128xf32, #tpu.memory_space<vmem>>, vector<16x128xf32>
    %2 = arith.subf %0, %1 : vector<16x128xf32>
    %3 = math.absf %2 : vector<16x128xf32>
    %cst = arith.constant dense<0.000000e+00> : vector<128xf32>
    %4 = vector.multi_reduction <add>, %3, %cst [0] : vector<16x128xf32> to vector<128xf32>
    %5 = vector.shape_cast %4 : vector<128xf32> to vector<1x128xf32>
    %6 = arith.mulf %2, %2 : vector<16x128xf32>
    %cst_3 = arith.constant dense<0.000000e+00> : vector<128xf32>
    %7 = vector.multi_reduction <add>, %6, %cst_3 [0] : vector<16x128xf32> to vector<128xf32>
    %8 = vector.shape_cast %7 : vector<128xf32> to vector<1x128xf32>
    %9 = tpu.concatenate %5, %8 in 0 : vector<1x128xf32>, vector<1x128xf32> -> vector<2x128xf32>
    %10 = vector.shape_cast %9 : vector<2x128xf32> to vector<1x2x128xf32>
    %c0_4 = arith.constant 0 : index
    %c0_5 = arith.constant 0 : index
    %c0_6 = arith.constant 0 : index
    %11 = vector.load %arg3[%c0_4, %c0_5, %c0_6] : memref<1x2x128xf32, #tpu.memory_space<vmem>>, vector<1x2x128xf32>
    tpu.vector_store %arg3[%c0_4, %c0_5, %c0_6], %10 {strides = array<i32>} : memref<1x2x128xf32, #tpu.memory_space<vmem>>, vector<1x2x128xf32>,
    return
  }
  func.func @transform_0(%arg0: i32) -> (i32, i32) {
    %c0_i32 = arith.constant 0 : i32
    %c0_i32_0 = arith.constant 0 : i32
    return %arg0, %c0_i32 : i32, i32
  }
  func.func @transform_1(%arg0: i32) -> (i32, i32) {
    %c0_i32 = arith.constant 0 : i32
    %c0_i32_0 = arith.constant 0 : i32
    return %arg0, %c0_i32 : i32, i32
  }
  func.func @transform_2(%arg0: i32) -> (i32, i32, i32) {
    %c0_i32 = arith.constant 0 : i32
    %c0_i32_0 = arith.constant 0 : i32
    %c0_i32_1 = arith.constant 0 : i32
    return %arg0, %c0_i32, %c0_i32_0 : i32, i32, i32
  }
}

</mosaic_0001>

<llo_original>
// kernel: tpu_custom_call.1
$region0: #{tpu_custom_call.1}
  #allocation0 [shape = 'u32[]', space=smem, size = 0x4, offset = 0x4, fixed_abs, tag = 'smem constant byte address 0x4 - core index']
  #allocation1 [shape = 'u32[72,128]{1,0:T(1,128)}', space=vmem, size = 0x9000, scoped, tag = 'internal scratch']
  %s0 = inlined_call_operand.hbm [shape: f32[64,128], index: 0, kind: input, shape index: {}]
  %s1 = inlined_call_operand.hbm [shape: f32[64,128], index: 1, kind: input, shape index: {}]
  %s2 = inlined_call_operand.hbm [shape: f32[4,2,128], index: 2, kind: output, shape index: {}]
  %s3 = sld [smem:[#allocation0]]
  $region49: #{tpu_custom_call.1} parent=0
    _
  %s5 = ssub.s32 1, %s3
  %s6 = scalar_select 0, %s5, %s3
  $region1: #{tpu_custom_call.1} parent=0
    #allocation2 [shape = 'u8[16384]{0}', space=vmem, size = 0x4000, scoped, tag = 'input window, operand 0']
    #allocation3 [shape = 's32[2]{0}', space=sflag, size = 0x8, scoped, tag = 'scoped memory for tpu_custom_call.1']
    #allocation4 [shape = 's32[2]{0}', space=sflag, size = 0x8, scoped, tag = 'scoped memory for tpu_custom_call.1']
    #allocation5 [shape = 'u8[16384]{0}', space=vmem, size = 0x4000, scoped, tag = 'input window, operand 1']
    #allocation6 [shape = 's32[2]{0}', space=sflag, size = 0x8, scoped, tag = 'scoped memory for tpu_custom_call.1']
    #allocation7 [shape = 'u8[2048]{0}', space=vmem, size = 0x800, scoped, tag = 'output window, operand 0']
    %7 = vsyncpa [#allocation3], 0
    %s8 = scalar_lea.sflag [#allocation3], 1
    %9 = vsyncpa %s8, 0
    %10 = vsyncpa [#allocation6], 0
    %s11 = scalar_lea.sflag [#allocation6], 1
    %12 = vsyncpa %s11, 0
    %13 = vsyncpa [#allocation4], 0
    %s14 = scalar_lea.sflag [#allocation4], 1
    %15 = vsyncpa %s14, 0
    loop: start=0, step=1, limit=6
    $region2: #{tpu_custom_call.1} parent=1 // loop_pre_header
      _
    $region3: #{tpu_custom_call.1} parent=1 // loop_header
      %s17 = sphi 0, %s21
      %p18 = scmp.ge.s32.totalorder %s17, 6
      %s27 = sphi 0, %s29
      %s30 = sphi 0, %s27
      %s31 = sphi 0, %s30
      %s47 = sphi 0, %s31
      %s53 = sphi 0, %s55
      %s56 = sphi 0, %s53
      %s57 = sphi 0, %s56
      %s73 = sphi 0, %s57
      %s79 = sphi 0, %s81
      %s82 = sphi 0, %s79
      %s83 = sphi 0, %s82
      %s99 = sphi 0, %s83
    $region4: #{tpu_custom_call.1} parent=1 // loop_header_branch
      %20 = sbr.rel (%p18) target = $region8
    $region5: #{tpu_custom_call.1} parent=1 // loop_body
      %s22 = ssub.s32 %s17, 1
      %s23 = ssub.s32 %s17, 2
      %s24 = sadd.s32 %s17, 1
      %s25 = ssub.s32 %s17, %s24
      %p26 = scmp.eq.s32.totalorder %s25, 0
      %s28 = sadd.s32 %s27, 1
      %s29 = scalar_select %p26, %s27, %s28
      %p32 = pneg %p26
      %p33 = scmp.eq.s32.totalorder %s17, 3
      %p34 = por %p32, %p33
      %p35 = scmp.ne.s32.totalorder %s27, %s30
      %p36 = scmp.eq.s32.totalorder %s17, 0
      %p37 = por %p35, %p36
      %p38 = scmp.ne.s32.totalorder %s27, %s30
      %p39 = scmp.eq.s32.totalorder %s22, 3
      %p40 = por %p38, %p39
      %p41 = scmp.ne.s32.totalorder %s30, %s31
      %p42 = scmp.eq.s32.totalorder %s22, 0
      %p43 = por %p41, %p42
      %p44 = scmp.ne.s32.totalorder %s30, %s31
      %p45 = scmp.eq.s32.totalorder %s23, 3
      %p46 = por %p44, %p45
      %p48 = scmp.ne.s32.totalorder %s31, %s47
      %p49 = scmp.eq.s32.totalorder %s23, 0
      %p50 = por %p48, %p49
      %s51 = ssub.s32 %s17, %s24
      %p52 = scmp.eq.s32.totalorder %s51, 0
      %s54 = sadd.s32 %s53, 1
      %s55 = scalar_select %p52, %s53, %s54
      %p58 = pneg %p52
      %p59 = scmp.eq.s32.totalorder %s17, 3
      %p60 = por %p58, %p59
      %p61 = scmp.ne.s32.totalorder %s53, %s56
      %p62 = scmp.eq.s32.totalorder %s17, 0
      %p63 = por %p61, %p62
      %p64 = scmp.ne.s32.totalorder %s53, %s56
      %p65 = scmp.eq.s32.totalorder %s22, 3
      %p66 = por %p64, %p65
      %p67 = scmp.ne.s32.totalorder %s56, %s57
      %p68 = scmp.eq.s32.totalorder %s22, 0
      %p69 = por %p67, %p68
      %p70 = scmp.ne.s32.totalorder %s56, %s57
      %p71 = scmp.eq.s32.totalorder %s23, 3
      %p72 = por %p70, %p71
      %p74 = scmp.ne.s32.totalorder %s57, %s73
      %p75 = scmp.eq.s32.totalorder %s23, 0
      %p76 = por %p74, %p75
      %s77 = ssub.s32 %s17, %s24
      %p78 = scmp.eq.s32.totalorder %s77, 0
      %s80 = sadd.s32 %s79, 1
      %s81 = scalar_select %p78, %s79, %s80
      %p84 = pneg %p78
      %p85 = scmp.eq.s32.totalorder %s17, 3
      %p86 = por %p84, %p85
      %p87 = scmp.ne.s32.totalorder %s79, %s82
      %p88 = scmp.eq.s32.totalorder %s17, 0
      %p89 = por %p87, %p88
      %p90 = scmp.ne.s32.totalorder %s79, %s82
      %p91 = scmp.eq.s32.totalorder %s22, 3
      %p92 = por %p90, %p91
      %p93 = scmp.ne.s32.totalorder %s82, %s83
      %p94 = scmp.eq.s32.totalorder %s22, 0
      %p95 = por %p93, %p94
      %p96 = scmp.ne.s32.totalorder %s82, %s83
      %p97 = scmp.eq.s32.totalorder %s23, 3
      %p98 = por %p96, %p97
      %p100 = scmp.ne.s32.totalorder %s83, %s99
      %p101 = scmp.eq.s32.totalorder %s23, 0
      %p102 = por %p100, %p101
      %p103 = scmp.le.s32.totalorder 1, %s17
      %p104 = scmp.lt.s32.totalorder %s17, 5
      %p105 = pnand %p103, %p104
      %p106 = pneg %p105
      // Predicated region
      $region9: #{tpu_custom_call.1} parent=5 // pred_check
        _
      $region10: #{tpu_custom_call.1} parent=5 // pred_check_branch
        %108 = sbr.rel (%p105) target = $region12
      $region11: #{tpu_custom_call.1} parent=5 // pred_region
        %s109 = ssub.s32 %s17, 1
      $region12: #{tpu_custom_call.1} parent=5 // pred_fallthru
        _
      %p110 = scmp.lt.s32.totalorder %s17, 4
      // Predicated region
      $region13: #{tpu_custom_call.1} parent=5 // pred_check
        %p111 = pneg %p110
      $region14: #{tpu_custom_call.1} parent=5 // pred_check_branch
        %113 = sbr.rel (%p111) target = $region16
      $region15: #{tpu_custom_call.1} parent=5 // pred_region
        // Predicated region
        $region17: #{tpu_custom_call.1} parent=15 // pred_check
          %p114 = pneg %p37
        $region18: #{tpu_custom_call.1} parent=15 // pred_check_branch
          %116 = sbr.rel (%p114) target = $region20
        $region19: #{tpu_custom_call.1} parent=15 // pred_region
          %s117 = sand.u32 %s27, 1
          %s118 = scalar_lea.sflag [#allocation3], %s117
          %s119 = sand.u32 %s27, 1
          %s120 = smul.addr %s119, 16
          %s121 = scalar_lea.vmem [#allocation2], %s120
          %s122 = smul.u32 2, %s17
          %124 = vsyncadd %s118, 0
          %s125 = smul.addr %s122, 8
          %s126 = scalar_lea.hbm %s0, %s125
          %s127 = sshll.u32 %s126, 4
          %s128 = int_to_ptr.hbm [resolvable:$true] %s127
          %s129 = sshll.u32 %s121, 4
          %s130 = int_to_ptr.vmem [resolvable:$true] %s129
          %135 = dma.hbm_to_vmem [thread:$0]  %s128, 256, %s130, %s118, 128, 128, 8
        $region20: #{tpu_custom_call.1} parent=15 // pred_fallthru
          _
        // Predicated region
        $region21: #{tpu_custom_call.1} parent=15 // pred_check
          %p136 = pneg %p63
        $region22: #{tpu_custom_call.1} parent=15 // pred_check_branch
          %138 = sbr.rel (%p136) target = $region24
        $region23: #{tpu_custom_call.1} parent=15 // pred_region
          %s139 = sand.u32 %s53, 1
          %s140 = scalar_lea.sflag [#allocation6], %s139
          %s141 = sand.u32 %s53, 1
          %s142 = smul.addr %s141, 16
          %s143 = scalar_lea.vmem [#allocation5], %s142
          %s144 = smul.u32 2, %s17
          %146 = vsyncadd %s140, 0
          %s147 = smul.addr %s144, 8
          %s148 = scalar_lea.hbm %s1, %s147
          %s149 = sshll.u32 %s148, 4
          %s150 = int_to_ptr.hbm [resolvable:$true] %s149
          %s151 = sshll.u32 %s143, 4
          %s152 = int_to_ptr.vmem [resolvable:$true] %s151
          %157 = dma.hbm_to_vmem [thread:$0]  %s150, 256, %s152, %s140, 128, 128, 8
        $region24: #{tpu_custom_call.1} parent=15 // pred_fallthru
          _
      $region16: #{tpu_custom_call.1} parent=5 // pred_fallthru
        _
      %p158 = scmp.le.s32.totalorder 1, %s17
      %p159 = scmp.lt.s32.totalorder %s17, 5
      %p160 = pnand %p158, %p159
      %p161 = pneg %p160
      // Predicated region
      $region25: #{tpu_custom_call.1} parent=5 // pred_check
        _
      $region26: #{tpu_custom_call.1} parent=5 // pred_check_branch
        %163 = sbr.rel (%p160) target = $region28
      $region27: #{tpu_custom_call.1} parent=5 // pred_region
        %s164 = ssub.s32 %s17, 1
        %s165 = sand.u32 %s30, 1
        %s166 = scalar_lea.sflag [#allocation3], %s165
        %s167 = sand.u32 %s30, 1
        %s168 = smul.addr %s167, 16
        %s169 = scalar_lea.vmem [#allocation2], %s168
        // Predicated region
        $region29: #{tpu_custom_call.1} parent=27 // pred_check
          %p170 = pneg %p43
        $region30: #{tpu_custom_call.1} parent=27 // pred_check_branch
          %172 = sbr.rel (%p170) target = $region32
        $region31: #{tpu_custom_call.1} parent=27 // pred_region
          %174 = dma.done %s166, 256
        $region32: #{tpu_custom_call.1} parent=27 // pred_fallthru
          _
        %s175 = sand.u32 %s56, 1
        %s176 = scalar_lea.sflag [#allocation6], %s175
        %s177 = sand.u32 %s56, 1
        %s178 = smul.addr %s177, 16
        %s179 = scalar_lea.vmem [#allocation5], %s178
        // Predicated region
        $region33: #{tpu_custom_call.1} parent=27 // pred_check
          %p180 = pneg %p69
        $region34: #{tpu_custom_call.1} parent=27 // pred_check_branch
          %182 = sbr.rel (%p180) target = $region36
        $region35: #{tpu_custom_call.1} parent=27 // pred_region
          %184 = dma.done %s176, 256
        $region36: #{tpu_custom_call.1} parent=27 // pred_fallthru
          _
        %s185 = sand.u32 %s30, 1
        %s186 = scalar_lea.sflag [#allocation3], %s185
        %s187 = sand.u32 %s30, 1
        %s188 = smul.addr %s187, 16
        %s189 = scalar_lea.vmem [#allocation2], %s188
        %p190 = pneg %p43
        %p191 = pneg %p40
        %s192 = sand.u32 %s56, 1
        %s193 = scalar_lea.sflag [#allocation6], %s192
        %s194 = sand.u32 %s56, 1
        %s195 = smul.addr %s194, 16
        %s196 = scalar_lea.vmem [#allocation5], %s195
        %p197 = pneg %p69
        %p198 = pneg %p66
        %p199 = pneg %p95
        %p200 = pneg %p92
        %s201 = sand.u32 %s82, 1
        %s202 = scalar_lea.sflag [#allocation4], %s201
        %s203 = sand.u32 %s82, 1
        %s204 = smul.addr %s203, 2
        %s205 = scalar_lea.vmem [#allocation7], %s204
        %s206 = smul.u32 2, %s22
        %s207 = smul.u32 2, %s22
        %v208 = vld [vmem:[%s169] sm:$0xff]
        %v209 = vld [vmem:[%s169 + $0x8] sm:$0xff]
        %v210 = vld [vmem:[%s179] sm:$0xff]
        %v211 = vld [vmem:[%s179 + $0x8] sm:$0xff]
        %v212 = vsub.f32 %v208, %v210
        %v213 = vsub.f32 %v209, %v211
        %v214 = vand.u32 2147483647, %v212
        %v215 = vand.u32 2147483647, %v213
        %v216 = vadd.f32 %v214, %v215
        %v217 = vrot.slane %v216, 4
        %v218 = vadd.f32 %v216, %v217
        %v219 = vrot.slane %v218, 2
        %v220 = vadd.f32 %v218, %v219
        %v221 = vrot.slane %v220, 1
        %v222 = vadd.f32 %v220, %v221
        %v223 = vmul.f32 %v212, %v212
        %v224 = vmul.f32 %v213, %v213
        %v225 = vadd.f32 %v223, %v224
        %v226 = vrot.slane %v225, 4
        %v227 = vadd.f32 %v225, %v226
        %v228 = vrot.slane %v227, 2
        %v229 = vadd.f32 %v227, %v228
        %v230 = vrot.slane %v229, 1
        %v231 = vadd.f32 %v229, %v230
        %vm232 = vcmask 1040384
        %v233 = vsel %vm232, %v222, %v231
        %234 = vst [vmem:[%s205] sm:$0x3] %v233
        %s235 = sand.u32 %s82, 1
        %s236 = scalar_lea.sflag [#allocation4], %s235
        %s237 = sand.u32 %s82, 1
        %s238 = smul.addr %s237, 2
        %s239 = scalar_lea.vmem [#allocation7], %s238
        // Predicated region
        $region37: #{tpu_custom_call.1} parent=27 // pred_check
          %p240 = pneg %p92
        $region38: #{tpu_custom_call.1} parent=27 // pred_check_branch
          %242 = sbr.rel (%p240) target = $region40
        $region39: #{tpu_custom_call.1} parent=27 // pred_region
          %244 = vsyncadd %s236, 0
          %s245 = smul.addr %s22, 2
          %s246 = scalar_lea.hbm %s2, %s245
          %s248 = sshll.u32 %s239, 4
          %s249 = int_to_ptr.vmem [resolvable:$true] %s248
          %s250 = sshll.u32 %s246, 4
          %s251 = int_to_ptr.hbm [resolvable:$true] %s250
          %253 = dma.vmem_to_hbm [thread:$0]  %s249, 32, %s251, %s236
        $region40: #{tpu_custom_call.1} parent=27 // pred_fallthru
          _
      $region28: #{tpu_custom_call.1} parent=5 // pred_fallthru
        _
      %p254 = scmp.le.s32.totalorder 2, %s17
      // Predicated region
      $region41: #{tpu_custom_call.1} parent=5 // pred_check
        %p255 = pneg %p254
      $region42: #{tpu_custom_call.1} parent=5 // pred_check_branch
        %257 = sbr.rel (%p255) target = $region44
      $region43: #{tpu_custom_call.1} parent=5 // pred_region
        %s258 = ssub.s32 %s17, 2
        // Predicated region
        $region45: #{tpu_custom_call.1} parent=43 // pred_check
          %p259 = pneg %p98
        $region46: #{tpu_custom_call.1} parent=43 // pred_check_branch
          %261 = sbr.rel (%p259) target = $region48
        $region47: #{tpu_custom_call.1} parent=43 // pred_region
          %s262 = sand.u32 %s83, 1
          %s263 = scalar_lea.sflag [#allocation4], %s262
          %s264 = sand.u32 %s83, 1
          %s265 = smul.addr %s264, 2
          %s266 = scalar_lea.vmem [#allocation7], %s265
          %268 = dma.done %s263, 32
        $region48: #{tpu_custom_call.1} parent=43 // pred_fallthru
          _
      $region44: #{tpu_custom_call.1} parent=5 // pred_fallthru
        _
    $region6: #{tpu_custom_call.1} parent=1 // loop_footer
      %s21 = sadd.s32 1, %s17
    $region7: #{tpu_custom_call.1} parent=1 // loop_footer_branch
      %16 = sbr.rel target = $region3
    $region8: #{tpu_custom_call.1} parent=1 // loop_exit
      _
    %269 = vsyncpa [#allocation3], 1
    %s270 = scalar_lea.sflag [#allocation3], 1
    %271 = vsyncpa %s270, 1
    %272 = vsyncpa [#allocation6], 1
    %s273 = scalar_lea.sflag [#allocation6], 1
    %274 = vsyncpa %s273, 1
    %275 = vsyncpa [#allocation4], 1
    %s276 = scalar_lea.sflag [#allocation4], 1
    %277 = vsyncpa %s276, 1

</llo_original>
